<compile_context>
chip_gen: v6e
topology: v6e:2x2x1
jax: 0.10.0
libtpu: 0.0.40
codegen_flags: <defaults>
</compile_context>

<pallas_src>
import jax
import jax.numpy as jnp
from jax.experimental import pallas as pl
from jax.experimental.pallas import tpu as pltpu

_LANE = 128
_SUBLANE = 8


def _round_up(n, m):
    return ((n + m - 1) // m) * m


def _mlp_kernel(x_ref, w1_ref, b1_ref, w2_ref, b2_ref, w3_ref, b3_ref, o_ref):
    # Entire forward pass fused; one invocation per batch tile.
    #
    # Ragged-grid invariant: with grid = cdiv(B, bm) the last batch tile may
    # extend past B. Every output row depends only on its own x row, so garbage
    # rows never contaminate valid rows and their writes land outside the
    # (B, C) output. Do NOT add any batch-axis reduction here without
    # reinstating explicit padding/masking.
    wdt = w1_ref.dtype
    x = x_ref[...].astype(wdt)

    # fc1 + leaky_relu(0.2)  (max(h, 0.2h) == leaky_relu for slope in (0, 1))
    h1 = jnp.dot(x, w1_ref[...], preferred_element_type=jnp.float32) + b1_ref[...]
    h1 = jnp.maximum(h1, 0.2 * h1)

    # fc2 + sigmoid (exact tanh form: single EUP op per vreg; mul/add on VALU)
    h2 = jnp.dot(h1.astype(wdt), w2_ref[...], preferred_element_type=jnp.float32) + b2_ref[...]
    h2 = 0.5 + 0.5 * jnp.tanh(0.5 * h2)

    # fc3 (logits, no activation)
    out = jnp.dot(h2.astype(wdt), w3_ref[...], preferred_element_type=jnp.float32) + b3_ref[...]
    o_ref[...] = out.astype(o_ref.dtype)


def prepare_params(params, *, weight_dtype=jnp.bfloat16):
    """One-time prep (call at init / param-load time, NOT per forward).

    Casts weights to the MXU-native dtype; biases stay float32 since they add
    into the f32 accumulator and feed the f32 EUP/VALU path.
    """
    prepped = dict(params)
    for k in ("w1", "w2", "w3"):
        prepped[k] = params[k].astype(weight_dtype)
    return prepped


def protein_classifier_forward(x, kparams, *, max_bm=2048):
    """x: [B, D_protein] float32. kparams: output of prepare_params()."""
    w1, b1 = kparams["w1"], kparams["b1"]
    w2, b2 = kparams["w2"], kparams["b2"]
    w3, b3 = kparams["w3"], kparams["b3"]

    B, D = x.shape
    H1 = w1.shape[1]          # 256
    H2 = w2.shape[1]          # 64
    C = w3.shape[1]           # class_num

    # --- batch tiling ---------------------------------------------------------
    # Small B: single block (one grid step; launch + DMA dominated anyway).
    # Large B: largest tile that fits VMEM comfortably, but always >= 2 grid
    # steps so the "parallel" batch axis can shard across both v7x TensorCores.
    # On single-TC v5e/v6e the grid is a serial loop, so bigger tiles simply
    # amortize per-step overhead. Weights (constant index_map) stay VMEM-resident.
    if B <= 256:
        bm = _round_up(B, _SUBLANE)
    else:
        bm = min(max_bm, _round_up(pl.cdiv(B, 2), _LANE))
    grid = (pl.cdiv(B, bm),)

    cost = pl.CostEstimate(
        flops=2 * B * (D * H1 + H1 * H2 + H2 * C),
        transcendentals=B * H2,
        bytes_accessed=(x.nbytes + w1.nbytes + b1.nbytes + w2.nbytes + b2.nbytes
                        + w3.nbytes + b3.nbytes + B * C * 4),
    )

    return pl.pallas_call(
        _mlp_kernel,
        out_shape=jax.ShapeDtypeStruct((B, C), jnp.float32),
        grid_spec=pltpu.PrefetchScalarGridSpec(
            num_scalar_prefetch=0,
            grid=grid,
            in_specs=[
                pl.BlockSpec((bm, D), lambda i: (i, 0)),     # x tile (streamed)
                pl.BlockSpec((D, H1), lambda i: (0, 0)),     # w1 (VMEM-resident)
                pl.BlockSpec((1, H1), lambda i: (0, 0)),     # b1
                pl.BlockSpec((H1, H2), lambda i: (0, 0)),    # w2
                pl.BlockSpec((1, H2), lambda i: (0, 0)),     # b2
                pl.BlockSpec((H2, C), lambda i: (0, 0)),     # w3
                pl.BlockSpec((1, C), lambda i: (0, 0)),      # b3
            ],
            out_specs=pl.BlockSpec((bm, C), lambda i: (i, 0)),  # unpadded output
        ),
        compiler_params=pltpu.CompilerParams(
            dimension_semantics=("parallel",),
            vmem_limit_bytes=32 * 1024 * 1024,
        ),
        cost_estimate=cost,
    )(x, w1, b1, w2, b2, w3, b3)


def init_params(key, protein_dim, class_num):
    """Deterministic init mimicking nn.Linear's uniform(-1/sqrt(fan_in), +1/sqrt(fan_in))."""
    dims = [(protein_dim, 256), (256, 64), (64, class_num)]
    params = {}
    for idx, (fan_in, fan_out) in enumerate(dims, start=1):
        key, kw, kb = jax.random.split(key, 3)
        bound = 1.0 / jnp.sqrt(fan_in)
        params[f"w{idx}"] = jax.random.uniform(
            kw, (fan_in, fan_out), jnp.float32, minval=-bound, maxval=bound)
        params[f"b{idx}"] = jax.random.uniform(
            kb, (1, fan_out), jnp.float32, minval=-bound, maxval=bound)
    return params


def _reference_forward(x, params):
    h1 = x @ params["w1"] + params["b1"]
    h1 = jnp.where(h1 > 0, h1, 0.2 * h1)
    h2 = jax.nn.sigmoid(h1 @ params["w2"] + params["b2"])
    return h2 @ params["w3"] + params["b3"]


if __name__ == "__main__":
    # Small shapes consistent with the module: data_size = {'protein': 128, 'class_num': 8}
    B, PROTEIN_DIM, CLASS_NUM = 8, 128, 8

    key = jax.random.PRNGKey(0)
    key, kx = jax.random.split(key)
    x = jax.random.normal(kx, (B, PROTEIN_DIM), jnp.float32)
    params = init_params(key, PROTEIN_DIM, CLASS_NUM)   # f32, nn.Linear-equivalent
    kparams = prepare_params(params)                    # one-time: bf16 weights

    out = jax.block_until_ready(protein_classifier_forward(x, kparams))
    ref = _reference_forward(x, params)
    assert out.shape == (B, CLASS_NUM)
    # bf16 weights/activation inputs on the MXU (f32 accumulation) vs f32 reference
    assert jnp.allclose(out, ref, atol=2e-2, rtol=2e-2), "mismatch (small batch)"

    # Larger batch exercises the multi-tile "parallel" grid path (2 steps here).
    B2 = 1024
    key, kx2 = jax.random.split(key)
    x2 = jax.random.normal(kx2, (B2, PROTEIN_DIM), jnp.float32)
    out2 = jax.block_until_ready(protein_classifier_forward(x2, kparams))
    ref2 = _reference_forward(x2, params)
    assert out2.shape == (B2, CLASS_NUM)
    assert jnp.allclose(out2, ref2, atol=2e-2, rtol=2e-2), "mismatch (tiled batch)"

    # TODO(synk): get_loss (log_softmax + nll_loss) is training-side, not part of forward.
    print("KERNEL_OK")
</pallas_src>

<mosaic_0001>
module attributes {stable_mosaic.version = 11 : i64} {
  func.func @_mlp_kernel(%arg0: i32, %arg1: memref<8x128xf32, #tpu.memory_space<vmem>>, %arg2: memref<128x256xbf16, #tpu.memory_space<vmem>>, %arg3: memref<1x256xf32, #tpu.memory_space<vmem>>, %arg4: memref<256x64xbf16, #tpu.memory_space<vmem>>, %arg5: memref<1x64xf32, #tpu.memory_space<vmem>>, %arg6: memref<64x8xbf16, #tpu.memory_space<vmem>>, %arg7: memref<1x8xf32, #tpu.memory_space<vmem>>, %arg8: memref<8x8xf32, #tpu.memory_space<vmem>>) attributes {dimension_semantics = [#tpu.dimension_semantics<parallel>], iteration_bounds = array<i64: 1>, scalar_prefetch = 0 : i64, scratch_operands = 0 : i64, tpu.core_type = #tpu.core_type<tc>, window_params = [{transform_indices = @transform_0, window_bounds = array<i64: 8, 128>}, {pipeline_mode = #tpu.pipeline_mode<synchronous>, transform_indices = @transform_1, window_bounds = array<i64: 128, 256>}, {pipeline_mode = #tpu.pipeline_mode<synchronous>, transform_indices = @transform_2, window_bounds = array<i64: 1, 256>}, {pipeline_mode = #tpu.pipeline_mode<synchronous>, transform_indices = @transform_3, window_bounds = array<i64: 256, 64>}, {pipeline_mode = #tpu.pipeline_mode<synchronous>, transform_indices = @transform_4, window_bounds = array<i64: 1, 64>}, {pipeline_mode = #tpu.pipeline_mode<synchronous>, transform_indices = @transform_5, window_bounds = array<i64: 64, 8>}, {pipeline_mode = #tpu.pipeline_mode<synchronous>, transform_indices = @transform_6, window_bounds = array<i64: 1, 8>}, {transform_indices = @transform_7, window_bounds = array<i64: 8, 8>}]} {
    %c0 = arith.constant 0 : index
    %c0_0 = arith.constant 0 : index
    %0 = vector.load %arg1[%c0, %c0_0] : memref<8x128xf32, #tpu.memory_space<vmem>>, vector<8x128xf32>
    %1 = arith.truncf %0 : vector<8x128xf32> to vector<8x128xbf16>
    %c0_1 = arith.constant 0 : index
    %c0_2 = arith.constant 0 : index
    %2 = vector.load %arg2[%c0_1, %c0_2] : memref<128x256xbf16, #tpu.memory_space<vmem>>, vector<128x256xbf16>
    %cst = arith.constant dense<0.000000e+00> : vector<8x256xf32>
    %3 = tpu.matmul %1, %2, %cst {dimension_numbers = #tpu.dot_dimension_numbers<[1], [0], [0], [1], [0, 0, 1, 1], [], []>} : vector<8x128xbf16>, vector<128x256xbf16>, vector<8x256xf32> -> vector<8x256xf32>
    %c0_3 = arith.constant 0 : index
    %c0_4 = arith.constant 0 : index
    %4 = vector.load %arg3[%c0_3, %c0_4] : memref<1x256xf32, #tpu.memory_space<vmem>>, vector<1x256xf32>
    %5 = vector.broadcast %4 : vector<1x256xf32> to vector<8x256xf32>
    %6 = arith.addf %3, %5 : vector<8x256xf32>
    %cst_5 = arith.constant 2.000000e-01 : f32
    %7 = vector.broadcast %cst_5 : f32 to vector<8x256xf32>
    %8 = arith.mulf %7, %6 : vector<8x256xf32>
    %9 = arith.maximumf %6, %8 : vector<8x256xf32>
    %10 = arith.truncf %9 : vector<8x256xf32> to vector<8x256xbf16>
    %c0_6 = arith.constant 0 : index
    %c0_7 = arith.constant 0 : index
    %11 = vector.load %arg4[%c0_6, %c0_7] : memref<256x64xbf16, #tpu.memory_space<vmem>>, vector<256x64xbf16>
    %cst_8 = arith.constant dense<0.000000e+00> : vector<8x64xf32>
    %12 = tpu.matmul %10, %11, %cst_8 {dimension_numbers = #tpu.dot_dimension_numbers<[1], [0], [0], [1], [0, 0, 1, 1], [], []>} : vector<8x256xbf16>, vector<256x64xbf16>, vector<8x64xf32> -> vector<8x64xf32>
    %c0_9 = arith.constant 0 : index
    %c0_10 = arith.constant 0 : index
    %13 = vector.load %arg5[%c0_9, %c0_10] : memref<1x64xf32, #tpu.memory_space<vmem>>, vector<1x64xf32>
    %14 = vector.broadcast %13 : vector<1x64xf32> to vector<8x64xf32>
    %15 = arith.addf %12, %14 : vector<8x64xf32>
    %cst_11 = arith.constant 5.000000e-01 : f32
    %16 = vector.broadcast %cst_11 : f32 to vector<8x64xf32>
    %17 = arith.mulf %16, %15 : vector<8x64xf32>
    %18 = math.tanh %17 : vector<8x64xf32>
    %cst_12 = arith.constant 5.000000e-01 : f32
    %19 = vector.broadcast %cst_12 : f32 to vector<8x64xf32>
    %20 = arith.mulf %19, %18 : vector<8x64xf32>
    %cst_13 = arith.constant 5.000000e-01 : f32
    %21 = vector.broadcast %cst_13 : f32 to vector<8x64xf32>
    %22 = arith.addf %21, %20 : vector<8x64xf32>
    %23 = arith.truncf %22 : vector<8x64xf32> to vector<8x64xbf16>
    %c0_14 = arith.constant 0 : index
    %c0_15 = arith.constant 0 : index
    %24 = vector.load %arg6[%c0_14, %c0_15] : memref<64x8xbf16, #tpu.memory_space<vmem>>, vector<64x8xbf16>
    %cst_16 = arith.constant dense<0.000000e+00> : vector<8x8xf32>
    %25 = tpu.matmul %23, %24, %cst_16 {dimension_numbers = #tpu.dot_dimension_numbers<[1], [0], [0], [1], [0, 0, 1, 1], [], []>} : vector<8x64xbf16>, vector<64x8xbf16>, vector<8x8xf32> -> vector<8x8xf32>
    %c0_17 = arith.constant 0 : index
    %c0_18 = arith.constant 0 : index
    %26 = vector.load %arg7[%c0_17, %c0_18] : memref<1x8xf32, #tpu.memory_space<vmem>>, vector<1x8xf32>
    %27 = vector.broadcast %26 : vector<1x8xf32> to vector<8x8xf32>
    %28 = arith.addf %25, %27 : vector<8x8xf32>
    %c0_19 = arith.constant 0 : index
    %c0_20 = arith.constant 0 : index
    %29 = vector.load %arg8[%c0_19, %c0_20] : memref<8x8xf32, #tpu.memory_space<vmem>>, vector<8x8xf32>
    tpu.vector_store %arg8[%c0_19, %c0_20], %28 {strides = array<i32>} : memref<8x8xf32, #tpu.memory_space<vmem>>, vector<8x8xf32>,
    return
  }
  func.func @transform_0(%arg0: i32) -> (i32, i32) {
    %c0_i32 = arith.constant 0 : i32
    %c0_i32_0 = arith.constant 0 : i32
    return %arg0, %c0_i32 : i32, i32
  }
  func.func @transform_1(%arg0: i32) -> (i32, i32) {
    %c0_i32 = arith.constant 0 : i32
    %c0_i32_0 = arith.constant 0 : i32
    %c0_i32_1 = arith.constant 0 : i32
    return %c0_i32, %c0_i32_0 : i32, i32
  }
  func.func @transform_2(%arg0: i32) -> (i32, i32) {
    %c0_i32 = arith.constant 0 : i32
    %c0_i32_0 = arith.constant 0 : i32
    %c0_i32_1 = arith.constant 0 : i32
    return %c0_i32, %c0_i32_0 : i32, i32
  }
  func.func @transform_3(%arg0: i32) -> (i32, i32) {
    %c0_i32 = arith.constant 0 : i32
    %c0_i32_0 = arith.constant 0 : i32
    %c0_i32_1 = arith.constant 0 : i32
    return %c0_i32, %c0_i32_0 : i32, i32
  }
  func.func @transform_4(%arg0: i32) -> (i32, i32) {
    %c0_i32 = arith.constant 0 : i32
    %c0_i32_0 = arith.constant 0 : i32
    %c0_i32_1 = arith.constant 0 : i32
    return %c0_i32, %c0_i32_0 : i32, i32
  }
  func.func @transform_5(%arg0: i32) -> (i32, i32) {
    %c0_i32 = arith.constant 0 : i32
    %c0_i32_0 = arith.constant 0 : i32
    %c0_i32_1 = arith.constant 0 : i32
    return %c0_i32, %c0_i32_0 : i32, i32
  }
  func.func @transform_6(%arg0: i32) -> (i32, i32) {
    %c0_i32 = arith.constant 0 : i32
    %c0_i32_0 = arith.constant 0 : i32
    %c0_i32_1 = arith.constant 0 : i32
    return %c0_i32, %c0_i32_0 : i32, i32
  }
  func.func @transform_7(%arg0: i32) -> (i32, i32) {
    %c0_i32 = arith.constant 0 : i32
    %c0_i32_0 = arith.constant 0 : i32
    return %arg0, %c0_i32 : i32, i32
  }
}

</mosaic_0001>

<llo_original>
// kernel: tpu_custom_call.1
$region0: #{tpu_custom_call.1}
  #allocation0 [shape = 'u32[]', space=smem, size = 0x4, offset = 0x4, fixed_abs, tag = 'smem constant byte address 0x4 - core index']
  #allocation1 [shape = 'u32[144,128]{1,0:T(1,128)}', space=vmem, size = 0x12000, scoped, tag = 'internal scratch']
  %s0 = inlined_call_operand.vmem [shape: f32[8,128], index: 0, kind: input, shape index: {}]
  %s1 = inlined_call_operand.vmem [shape: bf16[128,256], index: 1, kind: input, shape index: {}]
  %s2 = inlined_call_operand.vmem [shape: f32[1,256], index: 2, kind: input, shape index: {}]
  %s3 = inlined_call_operand.vmem [shape: bf16[256,64], index: 3, kind: input, shape index: {}]
  %s4 = inlined_call_operand.vmem [shape: f32[1,64], index: 4, kind: input, shape index: {}]
  %s5 = inlined_call_operand.vmem [shape: bf16[64,8], index: 5, kind: input, shape index: {}]
  %s6 = inlined_call_operand.vmem [shape: f32[1,8], index: 6, kind: input, shape index: {}]
  %s7 = inlined_call_operand.hbm [shape: f32[8,8], index: 7, kind: output, shape index: {}]
  %s8 = sld [smem:[#allocation0]]
  $region38: #{tpu_custom_call.1} parent=0
    _
  %s10 = ssub.s32 1, %s8
  %s11 = scalar_select 0, %s10, %s8
  $region1: #{tpu_custom_call.1} parent=0
    #allocation2 [shape = 'u8[4096]{0}', space=vmem, size = 0x1000, scoped, tag = 'output window, operand 0, single buffered']
    #allocation3 [shape = 's32[1]{0}', space=sflag, size = 0x4, scoped, tag = 'scoped memory for tpu_custom_call.1']
    %12 = vsyncpa [#allocation3], 0
    // Predicated region
    $region2: #{tpu_custom_call.1} parent=1 // pred_check
      _
    $region3: #{tpu_custom_call.1} parent=1 // pred_check_branch
      %14 = sbr.rel (0) target = $region5
    $region4: #{tpu_custom_call.1} parent=1 // pred_region
      _
    $region5: #{tpu_custom_call.1} parent=1 // pred_fallthru
      _
    // Predicated region
    $region6: #{tpu_custom_call.1} parent=1 // pred_check
      _
    $region7: #{tpu_custom_call.1} parent=1 // pred_check_branch
      %16 = sbr.rel (0) target = $region9
    $region8: #{tpu_custom_call.1} parent=1 // pred_region
      _
    $region9: #{tpu_custom_call.1} parent=1 // pred_fallthru
      _
    // Predicated region
    $region10: #{tpu_custom_call.1} parent=1 // pred_check
      _
    $region11: #{tpu_custom_call.1} parent=1 // pred_check_branch
      %18 = sbr.rel (0) target = $region13
    $region12: #{tpu_custom_call.1} parent=1 // pred_region
      _
    $region13: #{tpu_custom_call.1} parent=1 // pred_fallthru
      _
    // Predicated region
    $region14: #{tpu_custom_call.1} parent=1 // pred_check
      _
    $region15: #{tpu_custom_call.1} parent=1 // pred_check_branch
      %20 = sbr.rel (0) target = $region17
    $region16: #{tpu_custom_call.1} parent=1 // pred_region
      _
    $region17: #{tpu_custom_call.1} parent=1 // pred_fallthru
      _
    // Predicated region
    $region18: #{tpu_custom_call.1} parent=1 // pred_check
      _
    $region19: #{tpu_custom_call.1} parent=1 // pred_check_branch
      %22 = sbr.rel (0) target = $region21
    $region20: #{tpu_custom_call.1} parent=1 // pred_region
      _
    $region21: #{tpu_custom_call.1} parent=1 // pred_fallthru
      _
    // Predicated region
    $region22: #{tpu_custom_call.1} parent=1 // pred_check
      _
    $region23: #{tpu_custom_call.1} parent=1 // pred_check_branch
      %24 = sbr.rel (0) target = $region25
    $region24: #{tpu_custom_call.1} parent=1 // pred_region
      _
    $region25: #{tpu_custom_call.1} parent=1 // pred_fallthru
      _
    // Predicated region
    $region26: #{tpu_custom_call.1} parent=1 // pred_check
      _
    $region27: #{tpu_custom_call.1} parent=1 // pred_check_branch
      %26 = sbr.rel (0) target = $region29
    $region28: #{tpu_custom_call.1} parent=1 // pred_region
      _
    $region29: #{tpu_custom_call.1} parent=1 // pred_fallthru
      _
    %v28 = vld [vmem:[%s0] sm:$0xff]
    %v29 = vpack.c.bf16 %v28, %v28
    %v30 = vld [vmem:[%s1] sm:$0xff]
    %v31 = vld [vmem:[%s1 + $0x8] sm:$0xff]
    %v32 = vld [vmem:[%s1 + $0x10] sm:$0xff]
    %v33 = vld [vmem:[%s1 + $0x18] sm:$0xff]
    %v34 = vld [vmem:[%s1 + $0x20] sm:$0xff]
    %v35 = vld [vmem:[%s1 + $0x28] sm:$0xff]
    %v36 = vld [vmem:[%s1 + $0x30] sm:$0xff]
    %v37 = vld [vmem:[%s1 + $0x38] sm:$0xff]
    %v38 = vld [vmem:[%s1 + $0x40] sm:$0xff]
    %v39 = vld [vmem:[%s1 + $0x48] sm:$0xff]
    %v40 = vld [vmem:[%s1 + $0x50] sm:$0xff]
    %v41 = vld [vmem:[%s1 + $0x58] sm:$0xff]
    %v42 = vld [vmem:[%s1 + $0x60] sm:$0xff]
    %v43 = vld [vmem:[%s1 + $0x68] sm:$0xff]
    %v44 = vld [vmem:[%s1 + $0x70] sm:$0xff]
    %v45 = vld [vmem:[%s1 + $0x78] sm:$0xff]
    %v46 = vld [vmem:[%s2] sm:$0x3]
    %v48 = vlaneseq
    %v49 = vshrl.u32 %v48, 7
    %v50 = vsub.s32 0, %v49
    %v51 = vrot.slane %v46, %v50
    %v52 = vlaneseq
    %v53 = vshrl.u32 %v52, 7
    %v54 = vsub.s32 1, %v53
    %v55 = vrot.slane %v46, %v54
    %v74 = vunpack.c.l.b16 %v30
    %v75 = vunpack.c.h.b16 %v30
    %v76 = vunpack.c.l.b16 %v31
    %v77 = vunpack.c.h.b16 %v31
    %v78 = vunpack.c.l.b16 %v32
    %v79 = vunpack.c.h.b16 %v32
    %v80 = vunpack.c.l.b16 %v33
    %v81 = vunpack.c.h.b16 %v33
    %v82 = vunpack.c.l.b16 %v34
    %v83 = vunpack.c.h.b16 %v34
    %v84 = vunpack.c.l.b16 %v35
    %v85 = vunpack.c.h.b16 %v35
    %v86 = vunpack.c.l.b16 %v36
    %v87 = vunpack.c.h.b16 %v36
    %v88 = vunpack.c.l.b16 %v37
    %v89 = vunpack.c.h.b16 %v37
    %v90 = vunpack.c.l.b16 %v38
    %v91 = vunpack.c.h.b16 %v38
    %v92 = vunpack.c.l.b16 %v39
    %v93 = vunpack.c.h.b16 %v39
    %v94 = vunpack.c.l.b16 %v40
    %v95 = vunpack.c.h.b16 %v40
    %v96 = vunpack.c.l.b16 %v41
    %v97 = vunpack.c.h.b16 %v41
    %v98 = vunpack.c.l.b16 %v42
    %v99 = vunpack.c.h.b16 %v42
    %v100 = vunpack.c.l.b16 %v43
    %v101 = vunpack.c.h.b16 %v43
    %v102 = vunpack.c.l.b16 %v44
    %v103 = vunpack.c.h.b16 %v44
    %v104 = vunpack.c.l.b16 %v45
    %v105 = vunpack.c.h.b16 %v45
    %v106 = vpack.c.b16 %v76, %v74
    %v107 = vpack.c.b16 %v77, %v75
    %v108 = vpack.c.b16 %v80, %v78
    %v109 = vpack.c.b16 %v81, %v79
    %v110 = vpack.c.b16 %v84, %v82
    %v111 = vpack.c.b16 %v85, %v83
    %v112 = vpack.c.b16 %v88, %v86
    %v113 = vpack.c.b16 %v89, %v87
    %v114 = vpack.c.b16 %v92, %v90
    %v115 = vpack.c.b16 %v93, %v91
    %v116 = vpack.c.b16 %v96, %v94
    %v117 = vpack.c.b16 %v97, %v95
    %v118 = vpack.c.b16 %v100, %v98
    %v119 = vpack.c.b16 %v101, %v99
    %v120 = vpack.c.b16 %v104, %v102
    %v121 = vpack.c.b16 %v105, %v103
    %138 = vmatprep.subr.bf16.mxu0 %v121
    %139 = vmatpush1.bf16.msra.mxu0 %v120
    %140 = vmatprep.subr.bf16.mxu0 %v119
    %141 = vmatpush1.bf16.msra.mxu0 %v118
    %142 = vmatprep.subr.bf16.mxu0 %v117
    %143 = vmatpush1.bf16.msra.mxu0 %v116
    %144 = vmatprep.subr.bf16.mxu0 %v115
    %145 = vmatpush1.bf16.msra.mxu0 %v114
    %146 = vmatprep.subr.bf16.mxu0 %v113
    %147 = vmatpush1.bf16.msra.mxu0 %v112
    %148 = vmatprep.subr.bf16.mxu0 %v111
    %149 = vmatpush1.bf16.msra.mxu0 %v110
    %150 = vmatprep.subr.bf16.mxu0 %v109
    %151 = vmatpush1.bf16.msra.mxu0 %v108
    %152 = vmatprep.subr.bf16.mxu0 %v107
    %153 = vmatpush1.bf16.msra.mxu0 %v106
    %154 = vmatprep.subr.bf16.mxu0 0
    %155 = vmatpush2.bf16.msra.mxu0 0
    %156 = vmatprep.subr.bf16.mxu0 0
    %157 = vmatpush2.bf16.msra.mxu0 0
    %158 = vmatprep.subr.bf16.mxu0 0
    %159 = vmatpush2.bf16.msra.mxu0 0
    %160 = vmatprep.subr.bf16.mxu0 0
    %161 = vmatpush2.bf16.msra.mxu0 0
    %162 = vmatprep.subr.bf16.mxu0 0
    %163 = vmatpush2.bf16.msra.mxu0 0
    %164 = vmatprep.subr.bf16.mxu0 0
    %165 = vmatpush2.bf16.msra.mxu0 0
    %166 = vmatprep.subr.bf16.mxu0 0
    %167 = vmatpush2.bf16.msra.mxu0 0
    %168 = vmatprep.subr.bf16.mxu0 0
    %169 = vmatpush2.bf16.msra.mxu0 0
    %170 = vmatprep.mubr.bf16.mxu0 0
    %171 = vmatmul.mubr.bf16.gmra.mxu0 %v29
    %v172 = vpop.f32.mrf.mxu0
    %v173 = vadd.f32 %v51, %v172
    %v174 = vpop.f32.mrf.mxu0
    %v175 = vadd.f32 %v55, %v174
    %v176 = vpop.f32.mrf.mxu0
    %v177 = vpop.f32.mrf.mxu0
    %178 = vdwg.mxu0
    %v179 = vmul.f32 %v173, 0.2
    %v180 = vmul.f32 %v175, 0.2
    %v181 = vmax.f32 %v173, %v179
    %v182 = vmax.f32 %v175, %v180
    %v183 = vpack.c.bf16 %v181, %v181
    %v184 = vpack.c.bf16 %v182, %v182
    %v185 = vld [vmem:[%s3] sm:$0xf]
    %v186 = vld [vmem:[%s3 + $0x4] sm:$0xf]
    %v187 = vld [vmem:[%s3 + $0x8] sm:$0xf]
    %v188 = vld [vmem:[%s3 + $0xc] sm:$0xf]
    %v189 = vld [vmem:[%s3 + $0x10] sm:$0xf]
    %v190 = vld [vmem:[%s3 + $0x14] sm:$0xf]
    %v191 = vld [vmem:[%s3 + $0x18] sm:$0xf]
    %v192 = vld [vmem:[%s3 + $0x1c] sm:$0xf]
    %v193 = vld [vmem:[%s3 + $0x20] sm:$0xf]
    %v194 = vld [vmem:[%s3 + $0x24] sm:$0xf]
    %v195 = vld [vmem:[%s3 + $0x28] sm:$0xf]
    %v196 = vld [vmem:[%s3 + $0x2c] sm:$0xf]
    %v197 = vld [vmem:[%s3 + $0x30] sm:$0xf]
    %v198 = vld [vmem:[%s3 + $0x34] sm:$0xf]
    %v199 = vld [vmem:[%s3 + $0x38] sm:$0xf]
    %v200 = vld [vmem:[%s3 + $0x3c] sm:$0xf]
    %v201 = vld [vmem:[%s3 + $0x40] sm:$0xf]
    %v202 = vld [vmem:[%s3 + $0x44] sm:$0xf]
    %v203 = vld [vmem:[%s3 + $0x48] sm:$0xf]
    %v204 = vld [vmem:[%s3 + $0x4c] sm:$0xf]
    %v205 = vld [vmem:[%s3 + $0x50] sm:$0xf]
    %v206 = vld [vmem:[%s3 + $0x54] sm:$0xf]
    %v207 = vld [vmem:[%s3 + $0x58] sm:$0xf]
    %v208 = vld [vmem:[%s3 + $0x5c] sm:$0xf]
    %v209 = vld [vmem:[%s3 + $0x60] sm:$0xf]
    %v210 = vld [vmem:[%s3 + $0x64] sm:$0xf]
    %v211 = vld [vmem:[%s3 + $0x68] sm:$0xf]
    %v212 = vld [vmem:[%s3 + $0x6c] sm:$0xf]
    %v213 = vld [vmem:[%s3 + $0x70] sm:$0xf]
    %v214 = vld [vmem:[%s3 + $0x74] sm:$0xf]
    %v215 = vld [vmem:[%s3 + $0x78] sm:$0xf]
    %v216 = vld [vmem:[%s3 + $0x7c] sm:$0xf]
    %v217 = vld [vmem:[%s4] sm:$0x1]
    %v219 = vlaneseq
    %v220 = vshrl.u32 %v219, 7
    %v221 = vsub.s32 0, %v220
    %v222 = vrot.slane %v217, %v221
    %v256 = vunpack.c.l.b16 %v185
    %v257 = vunpack.c.l.b16 %v186
    %v258 = vunpack.c.l.b16 %v187
    %v259 = vunpack.c.l.b16 %v188
    %v260 = vunpack.c.l.b16 %v189
    %v261 = vunpack.c.l.b16 %v190
    %v262 = vunpack.c.l.b16 %v191
    %v263 = vunpack.c.l.b16 %v192
    %v264 = vunpack.c.l.b16 %v193
    %v265 = vunpack.c.l.b16 %v194
    %v266 = vunpack.c.l.b16 %v195
    %v267 = vunpack.c.l.b16 %v196
    %v268 = vunpack.c.l.b16 %v197
    %v269 = vunpack.c.l.b16 %v198
    %v270 = vunpack.c.l.b16 %v199
    %v271 = vunpack.c.l.b16 %v200
    %v272 = vunpack.c.l.b16 %v201
    %v273 = vunpack.c.l.b16 %v202
    %v274 = vunpack.c.l.b16 %v203
    %v275 = vunpack.c.l.b16 %v204
    %v276 = vunpack.c.l.b16 %v205
    %v277 = vunpack.c.l.b16 %v206
    %v278 = vunpack.c.l.b16 %v207
    %v279 = vunpack.c.l.b16 %v208
    %v280 = vunpack.c.l.b16 %v209
    %v281 = vunpack.c.l.b16 %v210
    %v282 = vunpack.c.l.b16 %v211
    %v283 = vunpack.c.l.b16 %v212
    %v284 = vunpack.c.l.b16 %v213
    %v285 = vunpack.c.l.b16 %v214
    %v286 = vunpack.c.l.b16 %v215
    %v287 = vunpack.c.l.b16 %v216
    %v288 = vpack.c.b16 %v257, %v256
    %v289 = vpack.c.b16 %v259, %v258
    %v290 = vpack.c.b16 %v261, %v260
    %v291 = vpack.c.b16 %v263, %v262
    %v292 = vpack.c.b16 %v265, %v264
    %v293 = vpack.c.b16 %v267, %v266
    %v294 = vpack.c.b16 %v269, %v268
    %v295 = vpack.c.b16 %v271, %v270
    %v296 = vpack.c.b16 %v273, %v272
    %v297 = vpack.c.b16 %v275, %v274
    %v298 = vpack.c.b16 %v277, %v276
    %v299 = vpack.c.b16 %v279, %v278
    %v300 = vpack.c.b16 %v281, %v280
    %v301 = vpack.c.b16 %v283, %v282
    %v302 = vpack.c.b16 %v285, %v284
    %v303 = vpack.c.b16 %v287, %v286
    %320 = vmatprep.subr.bf16.mxu0 0
    %321 = vmatpush1.bf16.msra.mxu0 %v295
    %322 = vmatprep.subr.bf16.mxu0 0
    %323 = vmatpush1.bf16.msra.mxu0 %v294
    %324 = vmatprep.subr.bf16.mxu0 0
    %325 = vmatpush1.bf16.msra.mxu0 %v293
    %326 = vmatprep.subr.bf16.mxu0 0
    %327 = vmatpush1.bf16.msra.mxu0 %v292
    %328 = vmatprep.subr.bf16.mxu0 0
    %329 = vmatpush1.bf16.msra.mxu0 %v291
    %330 = vmatprep.subr.bf16.mxu0 0
    %331 = vmatpush1.bf16.msra.mxu0 %v290
    %332 = vmatprep.subr.bf16.mxu0 0
    %333 = vmatpush1.bf16.msra.mxu0 %v289
    %334 = vmatprep.subr.bf16.mxu0 0
    %335 = vmatpush1.bf16.msra.mxu0 %v288
    %336 = vmatprep.subr.bf16.mxu0 0
    %337 = vmatpush2.bf16.msra.mxu0 %v303
    %338 = vmatprep.subr.bf16.mxu0 0
    %339 = vmatpush2.bf16.msra.mxu0 %v302
    %340 = vmatprep.subr.bf16.mxu0 0
    %341 = vmatpush2.bf16.msra.mxu0 %v301
    %342 = vmatprep.subr.bf16.mxu0 0
    %343 = vmatpush2.bf16.msra.mxu0 %v300
    %344 = vmatprep.subr.bf16.mxu0 0
    %345 = vmatpush2.bf16.msra.mxu0 %v299
    %346 = vmatprep.subr.bf16.mxu0 0
    %347 = vmatpush2.bf16.msra.mxu0 %v298
    %348 = vmatprep.subr.bf16.mxu0 0
    %349 = vmatpush2.bf16.msra.mxu0 %v297
    %350 = vmatprep.subr.bf16.mxu0 0
    %351 = vmatpush2.bf16.msra.mxu0 %v296
    %352 = vmatprep.mubr.bf16.mxu0 %v184
    %353 = vmatmul.mubr.bf16.gmra.mxu0 %v183
    %v354 = vpop.f32.mrf.mxu0
    %v355 = vadd.f32 %v222, %v354
    %v356 = vpop.f32.mrf.mxu0
    %v357 = vpop.f32.mrf.mxu0
    %v358 = vpop.f32.mrf.mxu0
    %359 = vdwg.mxu0
    %v360 = vmul.f32 %v355, 0.5
    %v361 = vtanh.pop %v360
    %v362 = vmul.f32 %v361, 0.5
    %v363 = vadd.f32 %v362, 0.5
    %v364 = vpack.c.bf16 %v363, %v363
    %v365 = vld [vmem:[%s5] sm:$0xf]
    %v366 = vld [vmem:[%s5 + $0x4] sm:$0xf]
    %v367 = vld [vmem:[%s5 + $0x8] sm:$0xf]
    %v368 = vld [vmem:[%s5 + $0xc] sm:$0xf]
    %v369 = vld [vmem:[%s5 + $0x10] sm:$0xf]
    %v370 = vld [vmem:[%s5 + $0x14] sm:$0xf]
    %v371 = vld [vmem:[%s5 + $0x18] sm:$0xf]
    %v372 = vld [vmem:[%s5 + $0x1c] sm:$0xf]
    %v373 = vld [vmem:[%s6] sm:$0x1]
    %v375 = vlaneseq
    %v376 = vshrl.u32 %v375, 7
    %v377 = vsub.s32 0, %v376
    %v378 = vrot.slane %v373, %v377
    %v388 = vunpack.c.l.b16 %v365
    %v389 = vunpack.c.l.b16 %v366
    %v390 = vunpack.c.l.b16 %v367
    %v391 = vunpack.c.l.b16 %v368
    %v392 = vunpack.c.l.b16 %v369
    %v393 = vunpack.c.l.b16 %v370
    %v394 = vunpack.c.l.b16 %v371
    %v395 = vunpack.c.l.b16 %v372
    %v396 = vpack.c.b16 %v389, %v388
    %v397 = vpack.c.b16 %v391, %v390
    %v398 = vpack.c.b16 %v393, %v392
    %v399 = vpack.c.b16 %v395, %v394
    %vm404 = vcmask 523264
    %v406 = vsel %vm404, %v364, 0
    %408 = vmatprep.subr.bf16.mxu0 0
    %409 = vmatpush1.bf16.msra.mxu0 0
    %410 = vmatprep.subr.bf16.mxu0 0
    %411 = vmatpush1.bf16.msra.mxu0 0
    %412 = vmatprep.subr.bf16.mxu0 0
    %413 = vmatpush1.bf16.msra.mxu0 0
    %414 = vmatprep.subr.bf16.mxu0 0
    %415 = vmatpush1.bf16.msra.mxu0 0
    %416 = vmatprep.subr.bf16.mxu0 0
    %417 = vmatpush1.bf16.msra.mxu0 %v399
    %418 = vmatprep.subr.bf16.mxu0 0
    %419 = vmatpush1.bf16.msra.mxu0 %v398
    %420 = vmatprep.subr.bf16.mxu0 0
    %421 = vmatpush1.bf16.msra.mxu0 %v397
    %422 = vmatprep.subr.bf16.mxu0 0
    %423 = vmatpush1.bf16.msra.mxu0 %v396
    %424 = vmatprep.subr.bf16.mxu0 0
    %425 = vmatpush2.bf16.msra.mxu0 0
    %426 = vmatprep.subr.bf16.mxu0 0
    %427 = vmatpush2.bf16.msra.mxu0 0
    %428 = vmatprep.subr.bf16.mxu0 0
    %429 = vmatpush2.bf16.msra.mxu0 0
    %430 = vmatprep.subr.bf16.mxu0 0
    %431 = vmatpush2.bf16.msra.mxu0 0
    %432 = vmatprep.subr.bf16.mxu0 0
    %433 = vmatpush2.bf16.msra.mxu0 0
    %434 = vmatprep.subr.bf16.mxu0 0
    %435 = vmatpush2.bf16.msra.mxu0 0
    %436 = vmatprep.subr.bf16.mxu0 0
    %437 = vmatpush2.bf16.msra.mxu0 0
    %438 = vmatprep.subr.bf16.mxu0 0
    %439 = vmatpush2.bf16.msra.mxu0 0
    %440 = vmatprep.mubr.bf16.mxu0 0
    %441 = vmatmul.mubr.bf16.gmra.mxu0 %v406
    %v442 = vpop.f32.mrf.mxu0
    %v443 = vadd.f32 %v378, %v442
    %v444 = vpop.f32.mrf.mxu0
    %v445 = vpop.f32.mrf.mxu0
    %v446 = vpop.f32.mrf.mxu0
    %447 = vdwg.mxu0
    %vm448 = vcmask 64512
    %449 = vst.msk [vmem:[#allocation2] sm:$0xff] %vm448, %v443
    // Predicated region
    $region30: #{tpu_custom_call.1} parent=1 // pred_check
      _
    $region31: #{tpu_custom_call.1} parent=1 // pred_check_branch
      %451 = sbr.rel (0) target = $region33
    $region32: #{tpu_custom_call.1} parent=1 // pred_region
      %s453 = ssub.s32 128, 128
      %454 = vsyncadd [#allocation3], %s453
      %s456 = sshll.u32 [#allocation2], 4
      %s457 = int_to_ptr.vmem [resolvable:$true] %s456
      %459 = dma.vmem_to_hbm [thread:$0]  %s457, 128, %s7, [#allocation3]
    $region33: #{tpu_custom_call.1} parent=1 // pred_fallthru
      _
    // Predicated region
    $region34: #{tpu_custom_call.1} parent=1 // pred_check
      _
    $region35: #{tpu_custom_call.1} parent=1 // pred_check_branch
      %461 = sbr.rel (0) target = $region37
    $region36: #{tpu_custom_call.1} parent=1 // pred_region
      %462 = dma.done [#allocation3], 128
    $region37: #{tpu_custom_call.1} parent=1 // pred_fallthru
      _
    %463 = vsyncpa [#allocation3], 1

</llo_original>
